<compile_context>
chip_gen: v7x
topology: tpu7x:2x2x1
jax: 0.10.0
libtpu: 0.0.40
codegen_flags: <defaults>
</compile_context>

<pallas_src>
import functools

import jax
import jax.numpy as jnp
from jax.experimental import pallas as pl
from jax.experimental.pallas import tpu as pltpu


# ---------------------------------------------------------------------------
# Kernels
# ---------------------------------------------------------------------------
def _dist_from_eps(lhs_plus_eps, rhs):
    # torch.nn.PairwiseDistance default: ||x - y + eps||_2 along the last dim.
    d = lhs_plus_eps - rhs
    return jnp.sqrt(jnp.sum(d * d, axis=-1, keepdims=True))


def _triplet_partial_sum_kernel(a_ref, p_ref, n_ref, out_ref, *,
                                margin, eps, swap, tile_rows, total_rows):
    """One grid step: (tm, D) tiles in, a single f32 partial loss sum out.

    The partial sum is broadcast into an (8, 128)-aligned, lane-dense output
    block (unmasked vst, ~4 KiB VMEM per buffer); the wrapper reads [0, 0].
    """
    a = a_ref[...].astype(jnp.float32)
    pos = p_ref[...].astype(jnp.float32)
    neg = n_ref[...].astype(jnp.float32)

    a_eps = a + eps                      # hoisted: reused for both distances
    d_ap = _dist_from_eps(a_eps, pos)
    d_an = _dist_from_eps(a_eps, neg)
    if swap:                             # compile-time flag
        d_an = jnp.minimum(d_an, _dist_from_eps(pos + eps, neg))

    loss = jnp.maximum(d_ap - d_an + margin, 0.0)          # (tm, 1) f32

    # Mask rows past the logical end of the array (the last partial tile's
    # input buffer contains stale VMEM beyond the valid rows).
    if total_rows % tile_rows != 0:
        row = (pl.program_id(0) * tile_rows
               + jax.lax.broadcasted_iota(jnp.int32, loss.shape, 0))
        loss = jnp.where(row < total_rows, loss, 0.0)

    out_ref[...] = jnp.broadcast_to(jnp.sum(loss), out_ref.shape)


def _triplet_rowloss_kernel(a_ref, p_ref, n_ref, out_ref, *, margin, eps, swap):
    """Per-row triplet hinge loss for one (tm, D) tile (reduction='none')."""
    a = a_ref[...].astype(jnp.float32)
    pos = p_ref[...].astype(jnp.float32)
    neg = n_ref[...].astype(jnp.float32)

    a_eps = a + eps
    d_ap = _dist_from_eps(a_eps, pos)
    d_an = _dist_from_eps(a_eps, neg)
    if swap:
        d_an = jnp.minimum(d_an, _dist_from_eps(pos + eps, neg))

    # Writes past the array end (last partial tile) are dropped by Pallas.
    out_ref[...] = jnp.maximum(d_ap - d_an + margin, 0.0)


# ---------------------------------------------------------------------------
# Tile planning (generation-aware)
# ---------------------------------------------------------------------------
@functools.lru_cache(maxsize=None)
def _vmem_capacity_bytes():
    try:
        info = pltpu.get_tpu_info()
        cap = getattr(info, "vmem_capacity_bytes", None)
        if cap:
            return int(cap)
    except Exception:
        pass
    return 64 << 20   # conservative fallback (v7x-sized VMEM) — safe everywhere


def _ceil_to(x, m):
    return ((x + m - 1) // m) * m


def _tile_plan(n_rows, d, itemsize, needs_row_output):
    """Pick the tile row count, grid size, and VMEM limit for this problem."""
    vmem = _vmem_capacity_bytes()
    budget = int(vmem * 0.70)                         # pipelining + intermediates
    vmem_limit = int(min(int(vmem * 0.85), vmem - (6 << 20)))

    row_mult = max(8, 32 // max(1, itemsize))         # 8 f32 / 16 bf16 / 32 int8

    # Per-row VMEM cost: 3 double-buffered input streams + ~4 live f32
    # tile-sized intermediates + (reduction='none') the lane-padded (tm,1)
    # output double buffer.  Partial-sum output is a fixed ~8 KiB (ignored).
    per_row = 2 * 3 * d * itemsize + 4 * d * 4
    if needs_row_output:
        per_row += 2 * 128 * 4

    rows = max(1, budget // max(1, per_row))

    # Keep >= 2 grid steps whenever possible so both v7x TensorCores get work.
    if n_rows >= 2 * row_mult:
        rows = min(rows, _ceil_to(pl.cdiv(n_rows, 2), row_mult))

    if rows >= n_rows:
        rows = n_rows                                  # full extent, single block
    else:
        rows = max(row_mult, (rows // row_mult) * row_mult)
        rows = min(rows, n_rows)
    rows = max(rows, 1)
    # TODO(synk): feature dims so large that even row_mult rows exceed VMEM
    # would need a D-tiled "arbitrary" reduction axis; not implemented.

    return rows, pl.cdiv(n_rows, rows), vmem_limit


# ---------------------------------------------------------------------------
# Wrapper (jitted; margin/swap/reduction/eps static so everything fuses)
# ---------------------------------------------------------------------------
@functools.partial(jax.jit, static_argnames=("margin", "swap", "reduction", "eps"))
def _triplet_impl(anchor, positive, negative, *, margin, swap, reduction, eps):
    out_dtype = jnp.result_type(anchor.dtype, positive.dtype, negative.dtype)

    # Distance is taken along the last dim; flatten all leading dims to rows.
    if anchor.ndim <= 1:
        lead_shape = ()
        a2 = anchor.reshape(1, -1)
    else:
        lead_shape = anchor.shape[:-1]
        a2 = anchor.reshape(-1, anchor.shape[-1])
    p2 = positive.reshape(a2.shape)
    n2 = negative.reshape(a2.shape)

    R, D = a2.shape
    itemsize = max(jnp.dtype(x.dtype).itemsize for x in (a2, p2, n2))
    tm, num_tiles, vmem_limit = _tile_plan(R, D, itemsize, reduction == "none")

    in_spec = pl.BlockSpec((tm, D), lambda i: (i, 0))
    cparams = pltpu.CompilerParams(
        dimension_semantics=("parallel",),     # rows independent -> megacore
        vmem_limit_bytes=vmem_limit,
    )

    if reduction == "none":
        losses = pl.pallas_call(
            functools.partial(_triplet_rowloss_kernel,
                              margin=margin, eps=eps, swap=swap),
            out_shape=jax.ShapeDtypeStruct((R, 1), jnp.float32),
            grid_spec=pltpu.PrefetchScalarGridSpec(
                num_scalar_prefetch=0,
                grid=(num_tiles,),
                in_specs=[in_spec, in_spec, in_spec],
                out_specs=pl.BlockSpec((tm, 1), lambda i: (i, 0)),
            ),
            compiler_params=cparams,
        )(a2, p2, n2)
        return losses[:, 0].reshape(lead_shape).astype(out_dtype)

    # 'mean' / 'sum': one f32 partial sum per grid step, lane-dense output.
    partials = pl.pallas_call(
        functools.partial(_triplet_partial_sum_kernel,
                          margin=margin, eps=eps, swap=swap,
                          tile_rows=tm, total_rows=R),
        out_shape=jax.ShapeDtypeStruct((num_tiles * 8, 128), jnp.float32),
        grid_spec=pltpu.PrefetchScalarGridSpec(
            num_scalar_prefetch=0,
            grid=(num_tiles,),
            in_specs=[in_spec, in_spec, in_spec],
            out_specs=pl.BlockSpec((8, 128), lambda i: (i, 0)),
        ),
        compiler_params=cparams,
    )(a2, p2, n2)

    per_tile = partials.reshape(num_tiles, 8, 128)[:, 0, 0]     # num_tiles scalars
    total = jnp.sum(per_tile)                                    # f32 accumulation
    if reduction == "mean":
        total = total / jnp.float32(R)
    return total.astype(out_dtype)


def triplet_margin_with_distance_loss(anchor, positive, negative, *,
                                      margin: float = 1.0,
                                      swap: bool = False,
                                      reduction: str = "mean",
                                      eps: float = 1e-6):
    if anchor.shape != positive.shape or anchor.shape != negative.shape:
        raise ValueError("anchor, positive and negative must have the same shape")
    if reduction not in ("mean", "sum", "none"):
        raise ValueError(f"{reduction} is not a valid value for reduction")
    return _triplet_impl(anchor, positive, negative,
                         margin=float(margin), swap=bool(swap),
                         reduction=reduction, eps=float(eps))


class TripletMarginWithDistanceLoss:
    """JAX/Pallas port of torch.nn.TripletMarginWithDistanceLoss (forward only)."""

    def __init__(self, *, distance_function=None, margin: float = 1.0,
                 swap: bool = False, reduction: str = "mean"):
        # TODO(synk): arbitrary Python distance_function callables are not lowered
        # into the kernel; only the default nn.PairwiseDistance (p=2, eps=1e-6)
        # path is implemented.
        if distance_function is not None:
            raise NotImplementedError(
                "Only the default PairwiseDistance distance_function is supported "
                "in the Pallas kernel path.")
        self.margin = margin
        self.swap = swap
        self.reduction = reduction

    def __call__(self, anchor, positive, negative):
        return triplet_margin_with_distance_loss(
            anchor, positive, negative,
            margin=self.margin, swap=self.swap, reduction=self.reduction)


# ---------------------------------------------------------------------------
# Pure-JAX reference (matches torch semantics for the default distance fn)
# ---------------------------------------------------------------------------
def _ref_triplet(anchor, positive, negative, *, margin, swap, reduction, eps=1e-6):
    def dist(x, y):
        d = x.astype(jnp.float32) - y.astype(jnp.float32) + eps
        return jnp.sqrt(jnp.sum(d * d, axis=-1))

    d_ap = dist(anchor, positive)
    d_an = dist(anchor, negative)
    if swap:
        d_an = jnp.minimum(d_an, dist(positive, negative))
    out = jnp.maximum(d_ap - d_an + margin, 0.0)
    if reduction == "mean":
        return jnp.mean(out)
    if reduction == "sum":
        return jnp.sum(out)
    return out


if __name__ == "__main__":
    key = jax.random.PRNGKey(0)
    ka, kp, kn = jax.random.split(key, 3)

    # Embedding-style triplet batch: N anchors of dim 128 (like the torch example).
    N, D = 64, 128
    anchor = jax.random.normal(ka, (N, D), dtype=jnp.float32)
    positive = anchor + 0.1 * jax.random.normal(kp, (N, D), dtype=jnp.float32)
    negative = jax.random.normal(kn, (N, D), dtype=jnp.float32)

    loss_mod = TripletMarginWithDistanceLoss(margin=1.0, swap=False, reduction="mean")
    out = jax.block_until_ready(loss_mod(anchor, positive, negative))
    ref = _ref_triplet(anchor, positive, negative,
                       margin=1.0, swap=False, reduction="mean")
    assert jnp.allclose(out, ref, rtol=1e-5, atol=1e-5), (out, ref)

    # reduction='sum' with the same inputs.
    out_sum = jax.block_until_ready(
        triplet_margin_with_distance_loss(anchor, positive, negative,
                                          margin=1.0, reduction="sum"))
    ref_sum = _ref_triplet(anchor, positive, negative,
                           margin=1.0, swap=False, reduction="sum")
    assert jnp.allclose(out_sum, ref_sum, rtol=1e-5, atol=1e-4), (out_sum, ref_sum)

    # reduction='none' + swap=True on a ragged row count (exercises the partial
    # last grid block / dropped-writeback path) and a non-128 feature dim.
    N2, D2 = 50, 96
    k1, k2, k3 = jax.random.split(jax.random.PRNGKey(1), 3)
    a2 = jax.random.normal(k1, (N2, D2), dtype=jnp.float32)
    p2 = jax.random.normal(k2, (N2, D2), dtype=jnp.float32)
    n2 = jax.random.normal(k3, (N2, D2), dtype=jnp.float32)
    out_none = jax.block_until_ready(
        triplet_margin_with_distance_loss(a2, p2, n2, margin=0.5, swap=True,
                                          reduction="none"))
    ref_none = _ref_triplet(a2, p2, n2, margin=0.5, swap=True, reduction="none")
    assert out_none.shape == (N2,)
    assert jnp.allclose(out_none, ref_none, rtol=1e-5, atol=1e-5)

    # 'mean' on the ragged shape too (exercises the in-kernel row masking of the
    # partial last tile in the partial-sum path).
    out_mean2 = jax.block_until_ready(
        triplet_margin_with_distance_loss(a2, p2, n2, margin=0.5, swap=True,
                                          reduction="mean"))
    ref_mean2 = _ref_triplet(a2, p2, n2, margin=0.5, swap=True, reduction="mean")
    assert jnp.allclose(out_mean2, ref_mean2, rtol=1e-5, atol=1e-5)

    print("KERNEL_OK")
</pallas_src>

<mosaic_0001>
module attributes {stable_mosaic.version = 11 : i64} {
  func.func @_triplet_partial_sum_kernel(%arg0: i32, %arg1: memref<32x128xf32, #tpu.memory_space<vmem>>, %arg2: memref<32x128xf32, #tpu.memory_space<vmem>>, %arg3: memref<32x128xf32, #tpu.memory_space<vmem>>, %arg4: memref<8x128xf32, #tpu.memory_space<vmem>>) attributes {dimension_semantics = [#tpu.dimension_semantics<parallel>], iteration_bounds = array<i64: 2>, scalar_prefetch = 0 : i64, scratch_operands = 0 : i64, tpu.core_type = #tpu.core_type<tc>, window_params = [{transform_indices = @transform_0, window_bounds = array<i64: 32, 128>}, {transform_indices = @transform_1, window_bounds = array<i64: 32, 128>}, {transform_indices = @transform_2, window_bounds = array<i64: 32, 128>}, {transform_indices = @transform_3, window_bounds = array<i64: 8, 128>}]} {
    %c0 = arith.constant 0 : index
    %c0_0 = arith.constant 0 : index
    %0 = vector.load %arg1[%c0, %c0_0] : memref<32x128xf32, #tpu.memory_space<vmem>>, vector<32x128xf32>
    %c0_1 = arith.constant 0 : index
    %c0_2 = arith.constant 0 : index
    %1 = vector.load %arg2[%c0_1, %c0_2] : memref<32x128xf32, #tpu.memory_space<vmem>>, vector<32x128xf32>
    %c0_3 = arith.constant 0 : index
    %c0_4 = arith.constant 0 : index
    %2 = vector.load %arg3[%c0_3, %c0_4] : memref<32x128xf32, #tpu.memory_space<vmem>>, vector<32x128xf32>
    %cst = arith.constant 9.99999997E-7 : f32
    %3 = vector.broadcast %cst : f32 to vector<32x128xf32>
    %4 = arith.addf %0, %3 : vector<32x128xf32>
    %5 = arith.subf %4, %1 : vector<32x128xf32>
    %6 = arith.mulf %5, %5 : vector<32x128xf32>
    %cst_5 = arith.constant dense<0.000000e+00> : vector<32xf32>
    %7 = vector.multi_reduction <add>, %6, %cst_5 [1] : vector<32x128xf32> to vector<32xf32>
    %8 = vector.shape_cast %7 : vector<32xf32> to vector<32x1xf32>
    %9 = math.sqrt %8 : vector<32x1xf32>
    %10 = arith.subf %4, %2 : vector<32x128xf32>
    %11 = arith.mulf %10, %10 : vector<32x128xf32>
    %cst_6 = arith.constant dense<0.000000e+00> : vector<32xf32>
    %12 = vector.multi_reduction <add>, %11, %cst_6 [1] : vector<32x128xf32> to vector<32xf32>
    %13 = vector.shape_cast %12 : vector<32xf32> to vector<32x1xf32>
    %14 = math.sqrt %13 : vector<32x1xf32>
    %15 = arith.subf %9, %14 : vector<32x1xf32>
    %cst_7 = arith.constant 1.000000e+00 : f32
    %16 = vector.broadcast %cst_7 : f32 to vector<32x1xf32>
    %17 = arith.addf %15, %16 : vector<32x1xf32>
    %cst_8 = arith.constant 0.000000e+00 : f32
    %18 = vector.broadcast %cst_8 : f32 to vector<32x1xf32>
    %19 = arith.maximumf %17, %18 : vector<32x1xf32>
    %20 = vector.shape_cast %19 : vector<32x1xf32> to vector<1x32x1xf32>
    %cst_9 = arith.constant dense<0.000000e+00> : vector<1xf32>
    %21 = vector.multi_reduction <add>, %20, %cst_9 [1, 2] : vector<1x32x1xf32> to vector<1xf32>
    %22 = vector.shape_cast %21 : vector<1xf32> to vector<1x1x1xf32>
    %23 = vector.extract %22[0, 0, 0] : f32 from vector<1x1x1xf32>
    %24 = vector.broadcast %23 : f32 to vector<8x128xf32>
    %c0_10 = arith.constant 0 : index
    %c0_11 = arith.constant 0 : index
    %25 = vector.load %arg4[%c0_10, %c0_11] : memref<8x128xf32, #tpu.memory_space<vmem>>, vector<8x128xf32>
    tpu.vector_store %arg4[%c0_10, %c0_11], %24 {strides = array<i32>} : memref<8x128xf32, #tpu.memory_space<vmem>>, vector<8x128xf32>,
    return
  }
  func.func @transform_0(%arg0: i32) -> (i32, i32) {
    %c0_i32 = arith.constant 0 : i32
    %c0_i32_0 = arith.constant 0 : i32
    return %arg0, %c0_i32 : i32, i32
  }
  func.func @transform_1(%arg0: i32) -> (i32, i32) {
    %c0_i32 = arith.constant 0 : i32
    %c0_i32_0 = arith.constant 0 : i32
    return %arg0, %c0_i32 : i32, i32
  }
  func.func @transform_2(%arg0: i32) -> (i32, i32) {
    %c0_i32 = arith.constant 0 : i32
    %c0_i32_0 = arith.constant 0 : i32
    return %arg0, %c0_i32 : i32, i32
  }
  func.func @transform_3(%arg0: i32) -> (i32, i32) {
    %c0_i32 = arith.constant 0 : i32
    %c0_i32_0 = arith.constant 0 : i32
    return %arg0, %c0_i32 : i32, i32
  }
}

</mosaic_0001>

<llo_original>
// kernel: _triplet_impl.1
$region0: #{_triplet_impl.1}
  #allocation0 [shape = 'u32[]', space=smem, size = 0x4, offset = 0x4, fixed_abs, tag = 'smem constant byte address 0x4 - core index']
  #allocation1 [shape = 'u32[144,128]{1,0:T(1,128)}', space=vmem, size = 0x12000, scoped, tag = 'internal scratch']
  %s0 = inlined_call_operand.hbm [shape: f32[64,128], index: 0, kind: input, shape index: {}]
  %s1 = inlined_call_operand.hbm [shape: f32[64,128], index: 1, kind: input, shape index: {}]
  %s2 = inlined_call_operand.hbm [shape: f32[64,128], index: 2, kind: input, shape index: {}]
  %s3 = inlined_call_operand.vmem [shape: f32[16,128], index: 3, kind: output, shape index: {}]
  %s4 = sld [smem:[#allocation0]]
  $region57: #{_triplet_impl.1} parent=0
    _
  %s6 = ssub.s32 1, %s4
  %s7 = scalar_select 0, %s6, %s4
  $region1: #{_triplet_impl.1} parent=0
    #allocation2 [shape = 'u8[32768]{0}', space=vmem, size = 0x8000, scoped, tag = 'input window, operand 0']
    #allocation3 [shape = 's32[2]{0}', space=sflag, size = 0x8, scoped, tag = 'scoped memory for _triplet_impl.1']
    #allocation4 [shape = 'u8[32768]{0}', space=vmem, size = 0x8000, scoped, tag = 'input window, operand 1']
    #allocation5 [shape = 's32[2]{0}', space=sflag, size = 0x8, scoped, tag = 'scoped memory for _triplet_impl.1']
    #allocation6 [shape = 'u8[32768]{0}', space=vmem, size = 0x8000, scoped, tag = 'input window, operand 2']
    %8 = vsyncpa [#allocation3], 0
    %s9 = scalar_lea.sflag [#allocation3], 1
    %10 = vsyncpa %s9, 0
    %11 = vsyncpa [#allocation5], 0
    %s12 = scalar_lea.sflag [#allocation5], 1
    %13 = vsyncpa %s12, 0
    loop: start=0, step=1, limit=4
    $region2: #{_triplet_impl.1} parent=1 // loop_pre_header
      _
    $region3: #{_triplet_impl.1} parent=1 // loop_header
      %s15 = sphi 0, %s19
      %p16 = scmp.ge.s32.totalorder %s15, 4
      %s25 = sphi 0, %s27
      %s28 = sphi 0, %s25
      %s29 = sphi 0, %s28
      %s45 = sphi 0, %s29
      %s51 = sphi 0, %s53
      %s54 = sphi 0, %s51
      %s55 = sphi 0, %s54
      %s71 = sphi 0, %s55
      %s77 = sphi 0, %s79
      %s80 = sphi 0, %s77
      %s81 = sphi 0, %s80
      %s97 = sphi 0, %s81
      %s103 = sphi 0, %s105
      %s106 = sphi 0, %s103
      %s107 = sphi 0, %s106
      %s123 = sphi 0, %s107
    $region4: #{_triplet_impl.1} parent=1 // loop_header_branch
      %18 = sbr.rel (%p16) target = $region8
    $region5: #{_triplet_impl.1} parent=1 // loop_body
      %s20 = ssub.s32 %s15, 1
      %s21 = ssub.s32 %s15, 2
      %s22 = sadd.s32 %s15, 1
      %s23 = ssub.s32 %s15, %s22
      %p24 = scmp.eq.s32.totalorder %s23, 0
      %s26 = sadd.s32 %s25, 1
      %s27 = scalar_select %p24, %s25, %s26
      %p30 = pneg %p24
      %p31 = scmp.eq.s32.totalorder %s15, 1
      %p32 = por %p30, %p31
      %p33 = scmp.ne.s32.totalorder %s25, %s28
      %p34 = scmp.eq.s32.totalorder %s15, 0
      %p35 = por %p33, %p34
      %p36 = scmp.ne.s32.totalorder %s25, %s28
      %p37 = scmp.eq.s32.totalorder %s20, 1
      %p38 = por %p36, %p37
      %p39 = scmp.ne.s32.totalorder %s28, %s29
      %p40 = scmp.eq.s32.totalorder %s20, 0
      %p41 = por %p39, %p40
      %p42 = scmp.ne.s32.totalorder %s28, %s29
      %p43 = scmp.eq.s32.totalorder %s21, 1
      %p44 = por %p42, %p43
      %p46 = scmp.ne.s32.totalorder %s29, %s45
      %p47 = scmp.eq.s32.totalorder %s21, 0
      %p48 = por %p46, %p47
      %s49 = ssub.s32 %s15, %s22
      %p50 = scmp.eq.s32.totalorder %s49, 0
      %s52 = sadd.s32 %s51, 1
      %s53 = scalar_select %p50, %s51, %s52
      %p56 = pneg %p50
      %p57 = scmp.eq.s32.totalorder %s15, 1
      %p58 = por %p56, %p57
      %p59 = scmp.ne.s32.totalorder %s51, %s54
      %p60 = scmp.eq.s32.totalorder %s15, 0
      %p61 = por %p59, %p60
      %p62 = scmp.ne.s32.totalorder %s51, %s54
      %p63 = scmp.eq.s32.totalorder %s20, 1
      %p64 = por %p62, %p63
      %p65 = scmp.ne.s32.totalorder %s54, %s55
      %p66 = scmp.eq.s32.totalorder %s20, 0
      %p67 = por %p65, %p66
      %p68 = scmp.ne.s32.totalorder %s54, %s55
      %p69 = scmp.eq.s32.totalorder %s21, 1
      %p70 = por %p68, %p69
      %p72 = scmp.ne.s32.totalorder %s55, %s71
      %p73 = scmp.eq.s32.totalorder %s21, 0
      %p74 = por %p72, %p73
      %s75 = ssub.s32 %s15, %s22
      %p76 = scmp.eq.s32.totalorder %s75, 0
      %s78 = sadd.s32 %s77, 1
      %s79 = scalar_select %p76, %s77, %s78
      %p82 = pneg %p76
      %p83 = scmp.eq.s32.totalorder %s15, 1
      %p84 = por %p82, %p83
      %p85 = scmp.ne.s32.totalorder %s77, %s80
      %p86 = scmp.eq.s32.totalorder %s15, 0
      %p87 = por %p85, %p86
      %p88 = scmp.ne.s32.totalorder %s77, %s80
      %p89 = scmp.eq.s32.totalorder %s20, 1
      %p90 = por %p88, %p89
      %p91 = scmp.ne.s32.totalorder %s80, %s81
      %p92 = scmp.eq.s32.totalorder %s20, 0
      %p93 = por %p91, %p92
      %p94 = scmp.ne.s32.totalorder %s80, %s81
      %p95 = scmp.eq.s32.totalorder %s21, 1
      %p96 = por %p94, %p95
      %p98 = scmp.ne.s32.totalorder %s81, %s97
      %p99 = scmp.eq.s32.totalorder %s21, 0
      %p100 = por %p98, %p99
      %s101 = ssub.s32 %s15, %s22
      %p102 = scmp.eq.s32.totalorder %s101, 0
      %s104 = sadd.s32 %s103, 1
      %s105 = scalar_select %p102, %s103, %s104
      %p108 = pneg %p102
      %p109 = scmp.eq.s32.totalorder %s15, 1
      %p110 = por %p108, %p109
      %p111 = scmp.ne.s32.totalorder %s103, %s106
      %p112 = scmp.eq.s32.totalorder %s15, 0
      %p113 = por %p111, %p112
      %p114 = scmp.ne.s32.totalorder %s103, %s106
      %p115 = scmp.eq.s32.totalorder %s20, 1
      %p116 = por %p114, %p115
      %p117 = scmp.ne.s32.totalorder %s106, %s107
      %p118 = scmp.eq.s32.totalorder %s20, 0
      %p119 = por %p117, %p118
      %p120 = scmp.ne.s32.totalorder %s106, %s107
      %p121 = scmp.eq.s32.totalorder %s21, 1
      %p122 = por %p120, %p121
      %p124 = scmp.ne.s32.totalorder %s107, %s123
      %p125 = scmp.eq.s32.totalorder %s21, 0
      %p126 = por %p124, %p125
      %p127 = scmp.le.s32.totalorder 1, %s15
      %p128 = scmp.lt.s32.totalorder %s15, 3
      %p129 = pnand %p127, %p128
      %p130 = pneg %p129
      // Predicated region
      $region9: #{_triplet_impl.1} parent=5 // pred_check
        _
      $region10: #{_triplet_impl.1} parent=5 // pred_check_branch
        %132 = sbr.rel (%p129) target = $region12
      $region11: #{_triplet_impl.1} parent=5 // pred_region
        %s133 = ssub.s32 %s15, 1
      $region12: #{_triplet_impl.1} parent=5 // pred_fallthru
        _
      %p134 = scmp.lt.s32.totalorder %s15, 2
      // Predicated region
      $region13: #{_triplet_impl.1} parent=5 // pred_check
        %p135 = pneg %p134
      $region14: #{_triplet_impl.1} parent=5 // pred_check_branch
        %137 = sbr.rel (%p135) target = $region16
      $region15: #{_triplet_impl.1} parent=5 // pred_region
        // Predicated region
        $region17: #{_triplet_impl.1} parent=15 // pred_check
          %p138 = pneg %p35
        $region18: #{_triplet_impl.1} parent=15 // pred_check_branch
          %140 = sbr.rel (%p138) target = $region20
        $region19: #{_triplet_impl.1} parent=15 // pred_region
          %s141 = sand.u32 %s25, 1
          %s142 = scalar_lea.sflag [#allocation3], %s141
          %s143 = sand.u32 %s25, 1
          %s144 = smul.addr %s143, 32
          %s145 = scalar_lea.vmem [#allocation2], %s144
          %s146 = smul.u32 4, %s15
          %s148 = ssub.s32 512, 512
          %149 = vsyncadd %s142, %s148
          %s150 = smul.addr %s146, 128
          %s151 = scalar_lea.hbm %s0, %s150
          %s152 = sshll.u32 %s145, 4
          %s153 = int_to_ptr.vmem [resolvable:$true] %s152
          %158 = dma.hbm_to_vmem [thread:$0]  %s151, 512, %s153, %s142, 128, 128, 8
        $region20: #{_triplet_impl.1} parent=15 // pred_fallthru
          _
        // Predicated region
        $region21: #{_triplet_impl.1} parent=15 // pred_check
          %p159 = pneg %p61
        $region22: #{_triplet_impl.1} parent=15 // pred_check_branch
          %161 = sbr.rel (%p159) target = $region24
        $region23: #{_triplet_impl.1} parent=15 // pred_region
          %s162 = sand.u32 %s15, 1
          %s163 = scalar_lea.sflag [#allocation5], %s162
          %s164 = sand.u32 %s51, 1
          %s165 = smul.addr %s164, 32
          %s166 = scalar_lea.vmem [#allocation4], %s165
          %s167 = smul.u32 4, %s15
          %s169 = ssub.s32 512, 512
          %170 = vsyncadd %s163, %s169
          %s171 = smul.addr %s167, 128
          %s172 = scalar_lea.hbm %s1, %s171
          %s173 = sshll.u32 %s166, 4
          %s174 = int_to_ptr.vmem [resolvable:$true] %s173
          %179 = dma.hbm_to_vmem [thread:$0]  %s172, 512, %s174, %s163, 128, 128, 8
        $region24: #{_triplet_impl.1} parent=15 // pred_fallthru
          _
        // Predicated region
        $region25: #{_triplet_impl.1} parent=15 // pred_check
          %p180 = pneg %p87
        $region26: #{_triplet_impl.1} parent=15 // pred_check_branch
          %182 = sbr.rel (%p180) target = $region28
        $region27: #{_triplet_impl.1} parent=15 // pred_region
          %s183 = sand.u32 %s15, 1
          %s184 = scalar_lea.sflag [#allocation5], %s183
          %s185 = sand.u32 %s77, 1
          %s186 = smul.addr %s185, 32
          %s187 = scalar_lea.vmem [#allocation6], %s186
          %s188 = smul.u32 4, %s15
          %s190 = ssub.s32 512, 512
          %191 = vsyncadd %s184, %s190
          %s192 = smul.addr %s188, 128
          %s193 = scalar_lea.hbm %s2, %s192
          %s194 = sshll.u32 %s187, 4
          %s195 = int_to_ptr.vmem [resolvable:$true] %s194
          %200 = dma.hbm_to_vmem [thread:$0]  %s193, 512, %s195, %s184, 128, 128, 8
        $region28: #{_triplet_impl.1} parent=15 // pred_fallthru
          _
      $region16: #{_triplet_impl.1} parent=5 // pred_fallthru
        _
      %p201 = scmp.le.s32.totalorder 1, %s15
      %p202 = scmp.lt.s32.totalorder %s15, 3
      %p203 = pnand %p201, %p202
      %p204 = pneg %p203
      // Predicated region
      $region29: #{_triplet_impl.1} parent=5 // pred_check
        _
      $region30: #{_triplet_impl.1} parent=5 // pred_check_branch
        %206 = sbr.rel (%p203) target = $region32
      $region31: #{_triplet_impl.1} parent=5 // pred_region
        %s207 = ssub.s32 %s15, 1
        %s208 = sand.u32 %s28, 1
        %s209 = scalar_lea.sflag [#allocation3], %s208
        %s210 = sand.u32 %s28, 1
        %s211 = smul.addr %s210, 32
        %s212 = scalar_lea.vmem [#allocation2], %s211
        // Predicated region
        $region33: #{_triplet_impl.1} parent=31 // pred_check
          %p213 = pneg %p41
        $region34: #{_triplet_impl.1} parent=31 // pred_check_branch
          %215 = sbr.rel (%p213) target = $region36
        $region35: #{_triplet_impl.1} parent=31 // pred_region
          %216 = dma.done %s209, 512
        $region36: #{_triplet_impl.1} parent=31 // pred_fallthru
          _
        %s217 = sand.u32 %s20, 1
        %s218 = scalar_lea.sflag [#allocation5], %s217
        %s219 = sand.u32 %s54, 1
        %s220 = smul.addr %s219, 32
        %s221 = scalar_lea.vmem [#allocation4], %s220
        // Predicated region
        $region37: #{_triplet_impl.1} parent=31 // pred_check
          %p222 = pneg %p67
        $region38: #{_triplet_impl.1} parent=31 // pred_check_branch
          %224 = sbr.rel (%p222) target = $region40
        $region39: #{_triplet_impl.1} parent=31 // pred_region
          %225 = dma.done %s218, 512
        $region40: #{_triplet_impl.1} parent=31 // pred_fallthru
          _
        %s226 = sand.u32 %s20, 1
        %s227 = scalar_lea.sflag [#allocation5], %s226
        %s228 = sand.u32 %s80, 1
        %s229 = smul.addr %s228, 32
        %s230 = scalar_lea.vmem [#allocation6], %s229
        // Predicated region
        $region41: #{_triplet_impl.1} parent=31 // pred_check
          %p231 = pneg %p93
        $region42: #{_triplet_impl.1} parent=31 // pred_check_branch
          %233 = sbr.rel (%p231) target = $region44
        $region43: #{_triplet_impl.1} parent=31 // pred_region
          %234 = dma.done %s227, 512
        $region44: #{_triplet_impl.1} parent=31 // pred_fallthru
          _
        %s235 = sand.u32 %s28, 1
        %s236 = scalar_lea.sflag [#allocation3], %s235
        %s237 = sand.u32 %s28, 1
        %s238 = smul.addr %s237, 32
        %s239 = scalar_lea.vmem [#allocation2], %s238
        %p240 = pneg %p41
        %p241 = pneg %p38
        %s242 = sand.u32 %s20, 1
        %s243 = scalar_lea.sflag [#allocation5], %s242
        %s244 = sand.u32 %s54, 1
        %s245 = smul.addr %s244, 32
        %s246 = scalar_lea.vmem [#allocation4], %s245
        %p247 = pneg %p67
        %p248 = pneg %p64
        %s249 = sand.u32 %s20, 1
        %s250 = scalar_lea.sflag [#allocation5], %s249
        %s251 = sand.u32 %s80, 1
        %s252 = smul.addr %s251, 32
        %s253 = scalar_lea.vmem [#allocation6], %s252
        %p254 = pneg %p93
        %p255 = pneg %p90
        %p256 = pneg %p119
        %p257 = pneg %p116
        %p258 = scmp.lt.s32.totalorder %s20, 1
        %s259 = scalar_select %p258, %s20, 1
        %s260 = smul.addr %s259, 8
        %s261 = scalar_lea.vmem %s3, %s260
        %s262 = smul.u32 4, %s20
        %s263 = smul.u32 4, %s20
        %s264 = smul.u32 4, %s20
        %p265 = scmp.lt.s32.totalorder %s20, 1
        %s266 = scalar_select %p265, %s20, 1
        %s267 = smul.addr %s266, 8
        %s268 = scalar_lea.vmem %s3, %s267
        %v269 = vld [vmem:[%s212] sm:$0xff]
        %v270 = vld [vmem:[%s212 + $0x8] sm:$0xff]
        %v271 = vld [vmem:[%s212 + $0x10] sm:$0xff]
        %v272 = vld [vmem:[%s212 + $0x18] sm:$0xff]
        %v273 = vld [vmem:[%s221] sm:$0xff]
        %v274 = vld [vmem:[%s221 + $0x8] sm:$0xff]
        %v275 = vld [vmem:[%s221 + $0x10] sm:$0xff]
        %v276 = vld [vmem:[%s221 + $0x18] sm:$0xff]
        %v277 = vld [vmem:[%s230] sm:$0xff]
        %v278 = vld [vmem:[%s230 + $0x8] sm:$0xff]
        %v279 = vld [vmem:[%s230 + $0x10] sm:$0xff]
        %v280 = vld [vmem:[%s230 + $0x18] sm:$0xff]
        %v281 = vadd.f32 %v269, 1e-06
        %v282 = vadd.f32 %v270, 1e-06
        %v283 = vadd.f32 %v271, 1e-06
        %v284 = vadd.f32 %v272, 1e-06
        %v285 = vsub.f32 %v281, %v273
        %v286 = vsub.f32 %v282, %v274
        %v287 = vsub.f32 %v283, %v275
        %v288 = vsub.f32 %v284, %v276
        %v289 = vmul.f32 %v285, %v285
        %v290 = vmul.f32 %v286, %v286
        %v291 = vmul.f32 %v287, %v287
        %v292 = vmul.f32 %v288, %v288
        %293 = vadd.xlane.f32.xlu0 %v289
        %v294 = vpop.xlane.xlu0 %293
        %295 = vadd.xlane.f32.xlu0 %v290
        %v296 = vpop.xlane.xlu0 %295
        %297 = vadd.xlane.f32.xlu0 %v291
        %v298 = vpop.xlane.xlu0 %297
        %299 = vadd.xlane.f32.xlu0 %v292
        %v300 = vpop.xlane.xlu0 %299
        %v301 = vrsqrt.pop %v294
        %v302 = vmul.f32 %v294, %v301
        %vm303 = vcmp.eq.f32.partialorder %v294, inf
        %v304 = vsel %vm303, %v294, %v302
        %vm305 = vcmp.eq.f32.partialorder %v294, 0.0
        %v306 = vand.u32 %v294, 2147483648
        %v307 = vsel %vm305, %v306, %v304
        %v308 = vrsqrt.pop %v296
        %v309 = vmul.f32 %v296, %v308
        %vm310 = vcmp.eq.f32.partialorder %v296, inf
        %v311 = vsel %vm310, %v296, %v309
        %vm312 = vcmp.eq.f32.partialorder %v296, 0.0
        %v313 = vand.u32 %v296, 2147483648
        %v314 = vsel %vm312, %v313, %v311
        %v315 = vrsqrt.pop %v298
        %v316 = vmul.f32 %v298, %v315
        %vm317 = vcmp.eq.f32.partialorder %v298, inf
        %v318 = vsel %vm317, %v298, %v316
        %vm319 = vcmp.eq.f32.partialorder %v298, 0.0
        %v320 = vand.u32 %v298, 2147483648
        %v321 = vsel %vm319, %v320, %v318
        %v322 = vrsqrt.pop %v300
        %v323 = vmul.f32 %v300, %v322
        %vm324 = vcmp.eq.f32.partialorder %v300, inf
        %v325 = vsel %vm324, %v300, %v323
        %vm326 = vcmp.eq.f32.partialorder %v300, 0.0
        %v327 = vand.u32 %v300, 2147483648
        %v328 = vsel %vm326, %v327, %v325
        %v329 = vsub.f32 %v281, %v277
        %v330 = vsub.f32 %v282, %v278
        %v331 = vsub.f32 %v283, %v279
        %v332 = vsub.f32 %v284, %v280
        %v333 = vmul.f32 %v329, %v329
        %v334 = vmul.f32 %v330, %v330
        %v335 = vmul.f32 %v331, %v331
        %v336 = vmul.f32 %v332, %v332
        %337 = vadd.xlane.f32.xlu0 %v333
        %v338 = vpop.xlane.xlu0 %337
        %339 = vadd.xlane.f32.xlu0 %v334
        %v340 = vpop.xlane.xlu0 %339
        %341 = vadd.xlane.f32.xlu0 %v335
        %v342 = vpop.xlane.xlu0 %341
        %343 = vadd.xlane.f32.xlu0 %v336
        %v344 = vpop.xlane.xlu0 %343
        %v345 = vrsqrt.pop %v338
        %v346 = vmul.f32 %v338, %v345
        %vm347 = vcmp.eq.f32.partialorder %v338, inf
        %v348 = vsel %vm347, %v338, %v346
        %vm349 = vcmp.eq.f32.partialorder %v338, 0.0
        %v350 = vand.u32 %v338, 2147483648
        %v351 = vsel %vm349, %v350, %v348
        %v352 = vrsqrt.pop %v340
        %v353 = vmul.f32 %v340, %v352
        %vm354 = vcmp.eq.f32.partialorder %v340, inf
        %v355 = vsel %vm354, %v340, %v353
        %vm356 = vcmp.eq.f32.partialorder %v340, 0.0
        %v357 = vand.u32 %v340, 2147483648
        %v358 = vsel %vm356, %v357, %v355
        %v359 = vrsqrt.pop %v342
        %v360 = vmul.f32 %v342, %v359
        %vm361 = vcmp.eq.f32.partialorder %v342, inf
        %v362 = vsel %vm361, %v342, %v360
        %vm363 = vcmp.eq.f32.partialorder %v342, 0.0
        %v364 = vand.u32 %v342, 2147483648
        %v365 = vsel %vm363, %v364, %v362
        %v366 = vrsqrt.pop %v344
        %v367 = vmul.f32 %v344, %v366
        %vm368 = vcmp.eq.f32.partialorder %v344, inf
        %v369 = vsel %vm368, %v344, %v367
        %vm370 = vcmp.eq.f32.partialorder %v344, 0.0
        %v371 = vand.u32 %v344, 2147483648
        %v372 = vsel %vm370, %v371, %v369
        %v373 = vsub.f32 %v307, %v351
        %v374 = vsub.f32 %v314, %v358
        %v375 = vsub.f32 %v321, %v365
        %v376 = vsub.f32 %v328, %v372
        %v377 = vadd.f32 %v373, 1.0
        %v378 = vadd.f32 %v374, 1.0
        %v379 = vadd.f32 %v375, 1.0
        %v380 = vadd.f32 %v376, 1.0
        %v381 = vmax.f32 %v377, 0.0
        %v382 = vmax.f32 %v378, 0.0
        %v383 = vmax.f32 %v379, 0.0
        %v384 = vmax.f32 %v380, 0.0
        %vm385 = vcmask 7168
        %v386 = vsel %vm385, %v381, 0.0
        %v387 = vsel %vm385, %v382, 0.0
        %v388 = vadd.f32 %v386, %v387
        %v389 = vsel %vm385, %v383, 0.0
        %v390 = vadd.f32 %v388, %v389
        %v391 = vsel %vm385, %v384, 0.0
        %v392 = vadd.f32 %v390, %v391
        %393 = vadd.xlane.f32.xlu0 %v392
        %v394 = vpop.xlane.xlu0 %393
        %v395 = vrot.slane %v394, 4
        %v396 = vadd.f32 %v394, %v395
        %v397 = vrot.slane %v396, 2
        %v398 = vadd.f32 %v396, %v397
        %v399 = vrot.slane %v398, 1
        %v400 = vadd.f32 %v398, %v399
        %s401 = vtos %v400
        %v402 = vstv %s401
        %403 = vst [vmem:[%s268] sm:$0xff] %v402
        %p404 = scmp.lt.s32.totalorder %s20, 1
        %s405 = scalar_select %p404, %s20, 1
        %s406 = smul.addr %s405, 8
        %s407 = scalar_lea.vmem %s3, %s406
        // Predicated region
        $region45: #{_triplet_impl.1} parent=31 // pred_check
          %p408 = pneg %p116
        $region46: #{_triplet_impl.1} parent=31 // pred_check_branch
          %410 = sbr.rel (%p408) target = $region48
        $region47: #{_triplet_impl.1} parent=31 // pred_region
          _
        $region48: #{_triplet_impl.1} parent=31 // pred_fallthru
          _
      $region32: #{_triplet_impl.1} parent=5 // pred_fallthru
        _
      %p411 = scmp.le.s32.totalorder 2, %s15
      // Predicated region
      $region49: #{_triplet_impl.1} parent=5 // pred_check
        %p412 = pneg %p411
      $region50: #{_triplet_impl.1} parent=5 // pred_check_branch
        %414 = sbr.rel (%p412) target = $region52
      $region51: #{_triplet_impl.1} parent=5 // pred_region
        %s415 = ssub.s32 %s15, 2
        // Predicated region
        $region53: #{_triplet_impl.1} parent=51 // pred_check
          %p416 = pneg %p122
        $region54: #{_triplet_impl.1} parent=51 // pred_check_branch
          %418 = sbr.rel (%p416) target = $region56
        $region55: #{_triplet_impl.1} parent=51 // pred_region
          %p419 = scmp.lt.s32.totalorder %s21, 1
          %s420 = scalar_select %p419, %s21, 1
          %s421 = smul.addr %s420, 8
          %s422 = scalar_lea.vmem %s3, %s421
        $region56: #{_triplet_impl.1} parent=51 // pred_fallthru
          _
      $region52: #{_triplet_impl.1} parent=5 // pred_fallthru
        _
    $region6: #{_triplet_impl.1} parent=1 // loop_footer
      %s19 = sadd.s32 1, %s15
    $region7: #{_triplet_impl.1} parent=1 // loop_footer_branch
      %14 = sbr.rel target = $region3
    $region8: #{_triplet_impl.1} parent=1 // loop_exit
      _
    %423 = vsyncpa [#allocation3], 1
    %s424 = scalar_lea.sflag [#allocation3], 1
    %425 = vsyncpa %s424, 1
    %426 = vsyncpa [#allocation5], 1
    %s427 = scalar_lea.sflag [#allocation5], 1
    %428 = vsyncpa %s427, 1

</llo_original>
